<compile_context>
chip_gen: v7x
topology: tpu7x:2x2x1
jax: 0.10.0
libtpu: 0.0.40
codegen_flags: <defaults>
</compile_context>

<pallas_src>
import functools

import jax
import jax.numpy as jnp
from jax.experimental import pallas as pl
from jax.experimental.pallas import tpu as pltpu


def _round_up(x: int, m: int) -> int:
    return ((x + m - 1) // m) * m


def _choose_tile(n_tokens: int, row_bytes: int, *, max_rows: int,
                 target_bytes: int) -> int:
    """Tokens per grid step: multiple of 8, adaptive to row size."""
    t_cap = _round_up(max(n_tokens, 1), 8)
    by_bytes = max(8, (target_bytes // max(row_bytes, 1)) // 8 * 8)
    tile = min(t_cap, max_rows, by_bytes)
    return max(8, (tile // 8) * 8)


# ---------------------------------------------------------------------------
# Path 1: table resident in VMEM, gather with scalar-addressed vector loads.
# ---------------------------------------------------------------------------
def _vmem_gather_kernel(ids_ref, w_ref, o_ref, *, tile: int):
    """ids_ref: (T_pad,) int32 in SMEM (scalar prefetch)
       w_ref:   (V, D) weight table in VMEM
       o_ref:   (tile, D) pipelined VMEM output tile"""
    base = pl.program_id(0) * tile
    for t in range(tile):                      # static unroll (tile <= 128)
        row = ids_ref[base + t]                # scalar load from SMEM
        o_ref[pl.ds(t, 1), :] = w_ref[pl.ds(row, 1), :]


def _embed_vmem(ids, weight):
    T = ids.shape[0]
    V, D = weight.shape
    itemsize = jnp.dtype(weight.dtype).itemsize
    row_bytes = D * itemsize
    table_bytes = V * D * itemsize

    tile = _choose_tile(T, row_bytes, max_rows=128, target_bytes=256 << 10)
    T_pad = _round_up(T, tile)
    if T_pad != T:
        ids = jnp.pad(ids, (0, T_pad - T))     # pad ids gather row 0 (cheap, VMEM)
    grid = (T_pad // tile,)

    # Table may be double-buffered by the pipeline; budget for 2x + out tiles.
    vmem_limit = int(2 * table_bytes + 4 * tile * row_bytes + (4 << 20))

    out = pl.pallas_call(
        functools.partial(_vmem_gather_kernel, tile=tile),
        out_shape=jax.ShapeDtypeStruct((T_pad, D), weight.dtype),
        grid_spec=pltpu.PrefetchScalarGridSpec(
            num_scalar_prefetch=1,                                  # ids -> SMEM
            grid=grid,
            in_specs=[
                pl.BlockSpec((V, D), lambda i, ids_ref: (0, 0)),    # full table in VMEM
            ],
            out_specs=pl.BlockSpec((tile, D), lambda i, ids_ref: (i, 0)),
        ),
        compiler_params=pltpu.CompilerParams(
            dimension_semantics=("parallel",),                      # token axis
            vmem_limit_bytes=vmem_limit,
        ),
        cost_estimate=pl.CostEstimate(
            flops=0, transcendentals=0,
            bytes_accessed=int(table_bytes + 2 * T_pad * row_bytes),
        ),
    )(ids, weight)
    return out[:T]


# ---------------------------------------------------------------------------
# Path 2: table in HBM, per-row async DMA gather into the output tile.
# ---------------------------------------------------------------------------
def _dma_gather_kernel(ids_ref, w_hbm_ref, o_ref, sem, *, tile: int, total: int):
    """ids_ref:   (T_pad,) int32 in SMEM (scalar prefetch)
       w_hbm_ref: (V, D) weight table, left in HBM (memory_space=pl.ANY)
       o_ref:     (tile, D) pipelined VMEM output tile
       sem:       (1,) shared DMA semaphore"""
    base = pl.program_id(0) * tile
    guard = (total % tile) != 0                # static: padding exists at all?

    # All scalar id reads + DMA starts happen before the first wait so nothing
    # breaks SMEM sst->sld forwarding and all copies are in flight together.
    copies = []
    for t in range(tile):                      # static unroll
        row = ids_ref[base + t]
        cp = pltpu.make_async_copy(
            w_hbm_ref.at[pl.ds(row, 1), :],    # (1, D) row in HBM
            o_ref.at[pl.ds(t, 1), :],          # (1, D) row of the output tile
            sem.at[0],                         # one shared counted semaphore
        )
        if guard:
            @pl.when(base + t < total)         # skip DMAs for padded tail tokens
            def _(cp=cp):
                cp.start()
        else:
            cp.start()
        copies.append(cp)

    for t, cp in enumerate(copies):
        if guard:
            @pl.when(base + t < total)
            def _(cp=cp):
                cp.wait()
        else:
            cp.wait()


def _embed_dma(ids, weight):
    T = ids.shape[0]
    V, D = weight.shape
    itemsize = jnp.dtype(weight.dtype).itemsize
    row_bytes = D * itemsize

    # ~1 MiB of gathered bytes per grid step, capped at 256 rows (bounds the
    # number of in-flight descriptors / waits per step).
    tile = _choose_tile(T, row_bytes, max_rows=256, target_bytes=1 << 20)
    T_pad = _round_up(T, tile)
    if T_pad != T:
        ids = jnp.pad(ids, (0, T_pad - T))
    grid = (T_pad // tile,)

    out = pl.pallas_call(
        functools.partial(_dma_gather_kernel, tile=tile, total=T),
        out_shape=jax.ShapeDtypeStruct((T_pad, D), weight.dtype),
        grid_spec=pltpu.PrefetchScalarGridSpec(
            num_scalar_prefetch=1,                       # ids -> SMEM
            grid=grid,
            in_specs=[
                pl.BlockSpec(memory_space=pl.ANY),       # weight stays in HBM
            ],
            out_specs=pl.BlockSpec((tile, D), lambda i, ids_ref: (i, 0)),
            scratch_shapes=[pltpu.SemaphoreType.DMA((1,))],
        ),
        compiler_params=pltpu.CompilerParams(
            # Token axis is embarrassingly parallel (2x in-flight DMAs on v7x
            # megacore, neutral on v5e/v6e).
            dimension_semantics=("parallel",),
        ),
        cost_estimate=pl.CostEstimate(
            flops=0, transcendentals=0,
            bytes_accessed=int(2 * T_pad * row_bytes),
        ),
    )(ids, weight)
    return out[:T]


# ---------------------------------------------------------------------------
# Public wrapper (== VocabParallelEmbedding.forward with tp_size == 1).
# ---------------------------------------------------------------------------
_MAX_TOKENS_PER_CALL = 65536   # keeps the SMEM-resident id array <= 256 KiB


def vocab_parallel_embedding(x, weight, *, vmem_table_budget_bytes=8 << 20):
    """x: integer token ids (any shape). weight: (V, D). Returns x.shape + (D,)."""
    orig_shape = x.shape
    V, D = weight.shape
    itemsize = jnp.dtype(weight.dtype).itemsize
    table_bytes = V * D * itemsize

    x_flat = x.reshape(-1).astype(jnp.int32)
    T = x_flat.shape[0]
    if T == 0:
        return jnp.zeros((*orig_shape, D), weight.dtype)

    # F.embedding would error on out-of-range ids; a gather must never read an
    # OOB row, so clamp defensively (documented semantic difference).
    x_flat = jnp.clip(x_flat, 0, V - 1)

    use_vmem_path = table_bytes <= vmem_table_budget_bytes
    embed = _embed_vmem if use_vmem_path else _embed_dma

    # Chunk very long flattened batches so ids always fit comfortably in SMEM.
    chunks = []
    for s in range(0, T, _MAX_TOKENS_PER_CALL):
        chunks.append(embed(x_flat[s:s + _MAX_TOKENS_PER_CALL], weight))
    out = chunks[0] if len(chunks) == 1 else jnp.concatenate(chunks, axis=0)
    return out.reshape(*orig_shape, D)


if __name__ == "__main__":
    num_embeddings = 256    # vocab size (tp_size = 1 -> whole vocab on this shard)
    embedding_dim = 128
    batch, seq = 2, 8

    key = jax.random.PRNGKey(0)
    wkey, xkey = jax.random.split(key)
    # Deterministic synthetic weight (module's __init__ only defines the shape).
    weight = jax.random.normal(wkey, (num_embeddings, embedding_dim),
                               dtype=jnp.float32)
    x = jax.random.randint(xkey, (batch, seq), 0, num_embeddings,
                           dtype=jnp.int32)
    # Ragged length to exercise padding / tail-guard logic too.
    x_ragged = jax.random.randint(jax.random.PRNGKey(1), (3, 5), 0,
                                  num_embeddings, dtype=jnp.int32)

    # Reference: plain gather (== F.embedding semantics for tp_size == 1).
    y_ref = jnp.take(weight, x, axis=0)
    y_ref_ragged = jnp.take(weight, x_ragged, axis=0)

    # Path 1: VMEM-resident table (128 KiB table -> fast path).
    y_vmem = jax.block_until_ready(vocab_parallel_embedding(x, weight))
    assert y_vmem.shape == (batch, seq, embedding_dim)
    assert jnp.allclose(y_vmem, y_ref, atol=1e-5, rtol=1e-5)

    y_vmem_r = jax.block_until_ready(vocab_parallel_embedding(x_ragged, weight))
    assert jnp.allclose(y_vmem_r, y_ref_ragged, atol=1e-5, rtol=1e-5)

    # Path 2: force the HBM DMA gather path (as used for large vocab tables).
    y_dma = jax.block_until_ready(
        vocab_parallel_embedding(x, weight, vmem_table_budget_bytes=0))
    assert jnp.allclose(y_dma, y_ref, atol=1e-5, rtol=1e-5)

    y_dma_r = jax.block_until_ready(
        vocab_parallel_embedding(x_ragged, weight, vmem_table_budget_bytes=0))
    assert jnp.allclose(y_dma_r, y_ref_ragged, atol=1e-5, rtol=1e-5)

    print("KERNEL_OK")
</pallas_src>

<mosaic_0001>
module attributes {stable_mosaic.version = 11 : i64} {
  func.func @_vmem_gather_kernel(%arg0: i32, %arg1: memref<16xi32, #tpu.memory_space<smem>>, %arg2: memref<256x128xf32, #tpu.memory_space<vmem>>, %arg3: memref<16x128xf32, #tpu.memory_space<vmem>>) attributes {dimension_semantics = [#tpu.dimension_semantics<parallel>], iteration_bounds = array<i64: 1>, scalar_prefetch = 1 : i64, scratch_operands = 0 : i64, tpu.core_type = #tpu.core_type<tc>, window_params = [{pipeline_mode = #tpu.pipeline_mode<synchronous>, transform_indices = @transform_0, window_bounds = array<i64: 256, 128>}, {transform_indices = @transform_1, window_bounds = array<i64: 16, 128>}]} {
    %c16_i32 = arith.constant 16 : i32
    %0 = arith.muli %arg0, %c16_i32 : i32
    %c0_i32 = arith.constant 0 : i32
    %1 = arith.addi %0, %c0_i32 : i32
    %2 = arith.index_cast %1 : i32 to index
    %3 = memref.load %arg1[%2] : memref<16xi32, #tpu.memory_space<smem>>
    %4 = arith.index_cast %3 : i32 to index
    %c0 = arith.constant 0 : index
    %5 = vector.load %arg2[%4, %c0] : memref<256x128xf32, #tpu.memory_space<vmem>>, vector<1x128xf32>
    %c0_0 = arith.constant 0 : index
    %c0_1 = arith.constant 0 : index
    %6 = vector.load %arg3[%c0_0, %c0_1] : memref<16x128xf32, #tpu.memory_space<vmem>>, vector<1x128xf32>
    tpu.vector_store %arg3[%c0_0, %c0_1], %5 {strides = array<i32>} : memref<16x128xf32, #tpu.memory_space<vmem>>, vector<1x128xf32>,
    %c1_i32 = arith.constant 1 : i32
    %7 = arith.addi %0, %c1_i32 : i32
    %8 = arith.index_cast %7 : i32 to index
    %9 = memref.load %arg1[%8] : memref<16xi32, #tpu.memory_space<smem>>
    %10 = arith.index_cast %9 : i32 to index
    %c0_2 = arith.constant 0 : index
    %11 = vector.load %arg2[%10, %c0_2] : memref<256x128xf32, #tpu.memory_space<vmem>>, vector<1x128xf32>
    %c1 = arith.constant 1 : index
    %c0_3 = arith.constant 0 : index
    %12 = vector.load %arg3[%c1, %c0_3] : memref<16x128xf32, #tpu.memory_space<vmem>>, vector<1x128xf32>
    tpu.vector_store %arg3[%c1, %c0_3], %11 {strides = array<i32>} : memref<16x128xf32, #tpu.memory_space<vmem>>, vector<1x128xf32>,
    %c2_i32 = arith.constant 2 : i32
    %13 = arith.addi %0, %c2_i32 : i32
    %14 = arith.index_cast %13 : i32 to index
    %15 = memref.load %arg1[%14] : memref<16xi32, #tpu.memory_space<smem>>
    %16 = arith.index_cast %15 : i32 to index
    %c0_4 = arith.constant 0 : index
    %17 = vector.load %arg2[%16, %c0_4] : memref<256x128xf32, #tpu.memory_space<vmem>>, vector<1x128xf32>
    %c2 = arith.constant 2 : index
    %c0_5 = arith.constant 0 : index
    %18 = vector.load %arg3[%c2, %c0_5] : memref<16x128xf32, #tpu.memory_space<vmem>>, vector<1x128xf32>
    tpu.vector_store %arg3[%c2, %c0_5], %17 {strides = array<i32>} : memref<16x128xf32, #tpu.memory_space<vmem>>, vector<1x128xf32>,
    %c3_i32 = arith.constant 3 : i32
    %19 = arith.addi %0, %c3_i32 : i32
    %20 = arith.index_cast %19 : i32 to index
    %21 = memref.load %arg1[%20] : memref<16xi32, #tpu.memory_space<smem>>
    %22 = arith.index_cast %21 : i32 to index
    %c0_6 = arith.constant 0 : index
    %23 = vector.load %arg2[%22, %c0_6] : memref<256x128xf32, #tpu.memory_space<vmem>>, vector<1x128xf32>
    %c3 = arith.constant 3 : index
    %c0_7 = arith.constant 0 : index
    %24 = vector.load %arg3[%c3, %c0_7] : memref<16x128xf32, #tpu.memory_space<vmem>>, vector<1x128xf32>
    tpu.vector_store %arg3[%c3, %c0_7], %23 {strides = array<i32>} : memref<16x128xf32, #tpu.memory_space<vmem>>, vector<1x128xf32>,
    %c4_i32 = arith.constant 4 : i32
    %25 = arith.addi %0, %c4_i32 : i32
    %26 = arith.index_cast %25 : i32 to index
    %27 = memref.load %arg1[%26] : memref<16xi32, #tpu.memory_space<smem>>
    %28 = arith.index_cast %27 : i32 to index
    %c0_8 = arith.constant 0 : index
    %29 = vector.load %arg2[%28, %c0_8] : memref<256x128xf32, #tpu.memory_space<vmem>>, vector<1x128xf32>
    %c4 = arith.constant 4 : index
    %c0_9 = arith.constant 0 : index
    %30 = vector.load %arg3[%c4, %c0_9] : memref<16x128xf32, #tpu.memory_space<vmem>>, vector<1x128xf32>
    tpu.vector_store %arg3[%c4, %c0_9], %29 {strides = array<i32>} : memref<16x128xf32, #tpu.memory_space<vmem>>, vector<1x128xf32>,
    %c5_i32 = arith.constant 5 : i32
    %31 = arith.addi %0, %c5_i32 : i32
    %32 = arith.index_cast %31 : i32 to index
    %33 = memref.load %arg1[%32] : memref<16xi32, #tpu.memory_space<smem>>
    %34 = arith.index_cast %33 : i32 to index
    %c0_10 = arith.constant 0 : index
    %35 = vector.load %arg2[%34, %c0_10] : memref<256x128xf32, #tpu.memory_space<vmem>>, vector<1x128xf32>
    %c5 = arith.constant 5 : index
    %c0_11 = arith.constant 0 : index
    %36 = vector.load %arg3[%c5, %c0_11] : memref<16x128xf32, #tpu.memory_space<vmem>>, vector<1x128xf32>
    tpu.vector_store %arg3[%c5, %c0_11], %35 {strides = array<i32>} : memref<16x128xf32, #tpu.memory_space<vmem>>, vector<1x128xf32>,
    %c6_i32 = arith.constant 6 : i32
    %37 = arith.addi %0, %c6_i32 : i32
    %38 = arith.index_cast %37 : i32 to index
    %39 = memref.load %arg1[%38] : memref<16xi32, #tpu.memory_space<smem>>
    %40 = arith.index_cast %39 : i32 to index
    %c0_12 = arith.constant 0 : index
    %41 = vector.load %arg2[%40, %c0_12] : memref<256x128xf32, #tpu.memory_space<vmem>>, vector<1x128xf32>
    %c6 = arith.constant 6 : index
    %c0_13 = arith.constant 0 : index
    %42 = vector.load %arg3[%c6, %c0_13] : memref<16x128xf32, #tpu.memory_space<vmem>>, vector<1x128xf32>
    tpu.vector_store %arg3[%c6, %c0_13], %41 {strides = array<i32>} : memref<16x128xf32, #tpu.memory_space<vmem>>, vector<1x128xf32>,
    %c7_i32 = arith.constant 7 : i32
    %43 = arith.addi %0, %c7_i32 : i32
    %44 = arith.index_cast %43 : i32 to index
    %45 = memref.load %arg1[%44] : memref<16xi32, #tpu.memory_space<smem>>
    %46 = arith.index_cast %45 : i32 to index
    %c0_14 = arith.constant 0 : index
    %47 = vector.load %arg2[%46, %c0_14] : memref<256x128xf32, #tpu.memory_space<vmem>>, vector<1x128xf32>
    %c7 = arith.constant 7 : index
    %c0_15 = arith.constant 0 : index
    %48 = vector.load %arg3[%c7, %c0_15] : memref<16x128xf32, #tpu.memory_space<vmem>>, vector<1x128xf32>
    tpu.vector_store %arg3[%c7, %c0_15], %47 {strides = array<i32>} : memref<16x128xf32, #tpu.memory_space<vmem>>, vector<1x128xf32>,
    %c8_i32 = arith.constant 8 : i32
    %49 = arith.addi %0, %c8_i32 : i32
    %50 = arith.index_cast %49 : i32 to index
    %51 = memref.load %arg1[%50] : memref<16xi32, #tpu.memory_space<smem>>
    %52 = arith.index_cast %51 : i32 to index
    %c0_16 = arith.constant 0 : index
    %53 = vector.load %arg2[%52, %c0_16] : memref<256x128xf32, #tpu.memory_space<vmem>>, vector<1x128xf32>
    %c8 = arith.constant 8 : index
    %c0_17 = arith.constant 0 : index
    %54 = vector.load %arg3[%c8, %c0_17] : memref<16x128xf32, #tpu.memory_space<vmem>>, vector<1x128xf32>
    tpu.vector_store %arg3[%c8, %c0_17], %53 {strides = array<i32>} : memref<16x128xf32, #tpu.memory_space<vmem>>, vector<1x128xf32>,
    %c9_i32 = arith.constant 9 : i32
    %55 = arith.addi %0, %c9_i32 : i32
    %56 = arith.index_cast %55 : i32 to index
    %57 = memref.load %arg1[%56] : memref<16xi32, #tpu.memory_space<smem>>
    %58 = arith.index_cast %57 : i32 to index
    %c0_18 = arith.constant 0 : index
    %59 = vector.load %arg2[%58, %c0_18] : memref<256x128xf32, #tpu.memory_space<vmem>>, vector<1x128xf32>
    %c9 = arith.constant 9 : index
    %c0_19 = arith.constant 0 : index
    %60 = vector.load %arg3[%c9, %c0_19] : memref<16x128xf32, #tpu.memory_space<vmem>>, vector<1x128xf32>
    tpu.vector_store %arg3[%c9, %c0_19], %59 {strides = array<i32>} : memref<16x128xf32, #tpu.memory_space<vmem>>, vector<1x128xf32>,
    %c10_i32 = arith.constant 10 : i32
    %61 = arith.addi %0, %c10_i32 : i32
    %62 = arith.index_cast %61 : i32 to index
    %63 = memref.load %arg1[%62] : memref<16xi32, #tpu.memory_space<smem>>
    %64 = arith.index_cast %63 : i32 to index
    %c0_20 = arith.constant 0 : index
    %65 = vector.load %arg2[%64, %c0_20] : memref<256x128xf32, #tpu.memory_space<vmem>>, vector<1x128xf32>
    %c10 = arith.constant 10 : index
    %c0_21 = arith.constant 0 : index
    %66 = vector.load %arg3[%c10, %c0_21] : memref<16x128xf32, #tpu.memory_space<vmem>>, vector<1x128xf32>
    tpu.vector_store %arg3[%c10, %c0_21], %65 {strides = array<i32>} : memref<16x128xf32, #tpu.memory_space<vmem>>, vector<1x128xf32>,
    %c11_i32 = arith.constant 11 : i32
    %67 = arith.addi %0, %c11_i32 : i32
    %68 = arith.index_cast %67 : i32 to index
    %69 = memref.load %arg1[%68] : memref<16xi32, #tpu.memory_space<smem>>
    %70 = arith.index_cast %69 : i32 to index
    %c0_22 = arith.constant 0 : index
    %71 = vector.load %arg2[%70, %c0_22] : memref<256x128xf32, #tpu.memory_space<vmem>>, vector<1x128xf32>
    %c11 = arith.constant 11 : index
    %c0_23 = arith.constant 0 : index
    %72 = vector.load %arg3[%c11, %c0_23] : memref<16x128xf32, #tpu.memory_space<vmem>>, vector<1x128xf32>
    tpu.vector_store %arg3[%c11, %c0_23], %71 {strides = array<i32>} : memref<16x128xf32, #tpu.memory_space<vmem>>, vector<1x128xf32>,
    %c12_i32 = arith.constant 12 : i32
    %73 = arith.addi %0, %c12_i32 : i32
    %74 = arith.index_cast %73 : i32 to index
    %75 = memref.load %arg1[%74] : memref<16xi32, #tpu.memory_space<smem>>
    %76 = arith.index_cast %75 : i32 to index
    %c0_24 = arith.constant 0 : index
    %77 = vector.load %arg2[%76, %c0_24] : memref<256x128xf32, #tpu.memory_space<vmem>>, vector<1x128xf32>
    %c12 = arith.constant 12 : index
    %c0_25 = arith.constant 0 : index
    %78 = vector.load %arg3[%c12, %c0_25] : memref<16x128xf32, #tpu.memory_space<vmem>>, vector<1x128xf32>
    tpu.vector_store %arg3[%c12, %c0_25], %77 {strides = array<i32>} : memref<16x128xf32, #tpu.memory_space<vmem>>, vector<1x128xf32>,
    %c13_i32 = arith.constant 13 : i32
    %79 = arith.addi %0, %c13_i32 : i32
    %80 = arith.index_cast %79 : i32 to index
    %81 = memref.load %arg1[%80] : memref<16xi32, #tpu.memory_space<smem>>
    %82 = arith.index_cast %81 : i32 to index
    %c0_26 = arith.constant 0 : index
    %83 = vector.load %arg2[%82, %c0_26] : memref<256x128xf32, #tpu.memory_space<vmem>>, vector<1x128xf32>
    %c13 = arith.constant 13 : index
    %c0_27 = arith.constant 0 : index
    %84 = vector.load %arg3[%c13, %c0_27] : memref<16x128xf32, #tpu.memory_space<vmem>>, vector<1x128xf32>
    tpu.vector_store %arg3[%c13, %c0_27], %83 {strides = array<i32>} : memref<16x128xf32, #tpu.memory_space<vmem>>, vector<1x128xf32>,
    %c14_i32 = arith.constant 14 : i32
    %85 = arith.addi %0, %c14_i32 : i32
    %86 = arith.index_cast %85 : i32 to index
    %87 = memref.load %arg1[%86] : memref<16xi32, #tpu.memory_space<smem>>
    %88 = arith.index_cast %87 : i32 to index
    %c0_28 = arith.constant 0 : index
    %89 = vector.load %arg2[%88, %c0_28] : memref<256x128xf32, #tpu.memory_space<vmem>>, vector<1x128xf32>
    %c14 = arith.constant 14 : index
    %c0_29 = arith.constant 0 : index
    %90 = vector.load %arg3[%c14, %c0_29] : memref<16x128xf32, #tpu.memory_space<vmem>>, vector<1x128xf32>
    tpu.vector_store %arg3[%c14, %c0_29], %89 {strides = array<i32>} : memref<16x128xf32, #tpu.memory_space<vmem>>, vector<1x128xf32>,
    %c15_i32 = arith.constant 15 : i32
    %91 = arith.addi %0, %c15_i32 : i32
    %92 = arith.index_cast %91 : i32 to index
    %93 = memref.load %arg1[%92] : memref<16xi32, #tpu.memory_space<smem>>
    %94 = arith.index_cast %93 : i32 to index
    %c0_30 = arith.constant 0 : index
    %95 = vector.load %arg2[%94, %c0_30] : memref<256x128xf32, #tpu.memory_space<vmem>>, vector<1x128xf32>
    %c15 = arith.constant 15 : index
    %c0_31 = arith.constant 0 : index
    %96 = vector.load %arg3[%c15, %c0_31] : memref<16x128xf32, #tpu.memory_space<vmem>>, vector<1x128xf32>
    tpu.vector_store %arg3[%c15, %c0_31], %95 {strides = array<i32>} : memref<16x128xf32, #tpu.memory_space<vmem>>, vector<1x128xf32>,
    return
  }
  func.func @transform_0(%arg0: i32, %arg1: memref<16xi32, #tpu.memory_space<smem>>) -> (i32, i32) {
    %c0_i32 = arith.constant 0 : i32
    %c0_i32_0 = arith.constant 0 : i32
    %c0_i32_1 = arith.constant 0 : i32
    return %c0_i32, %c0_i32_0 : i32, i32
  }
  func.func @transform_1(%arg0: i32, %arg1: memref<16xi32, #tpu.memory_space<smem>>) -> (i32, i32) {
    %c0_i32 = arith.constant 0 : i32
    %c0_i32_0 = arith.constant 0 : i32
    return %arg0, %c0_i32 : i32, i32
  }
}

</mosaic_0001>

<llo_original>
// kernel: tpu_custom_call.1
$region0: #{tpu_custom_call.1}
  #allocation0 [shape = 'u32[]', space=smem, size = 0x4, offset = 0x4, fixed_abs, tag = 'smem constant byte address 0x4 - core index']
  #allocation1 [shape = 'u32[144,128]{1,0:T(1,128)}', space=vmem, size = 0x12000, scoped, tag = 'internal scratch']
  #allocation2 [shape = 's32[1]{0}', space=sflag, size = 0x4, scoped, tag = 'scoped memory for tpu_custom_call.1']
  #allocation3 [shape = 'u8[512]{0}', space=smem, size = 0x200, scoped, tag = 'prefetched SMEM operand 0']
  %s0 = inlined_call_operand.hbm [shape: s32[16], index: 0, kind: input, shape index: {}]
  %s1 = inlined_call_operand.hbm [shape: f32[256,128], index: 1, kind: input, shape index: {}]
  %s2 = inlined_call_operand.hbm [shape: f32[16,128], index: 2, kind: output, shape index: {}]
  %s3 = sld [smem:[#allocation0]]
  $region18: #{tpu_custom_call.1} parent=0
    _
  %s5 = ssub.s32 1, %s3
  %s6 = scalar_select 0, %s5, %s3
  %8 = dma.hbm_to_smem %s0, 16, [#allocation3], [#allocation2]
  %9 = dma.done [#allocation2], 16
  %10 = sfence
  $region1: #{tpu_custom_call.1} parent=0
    #allocation4 [shape = 'u8[131072]{0}', space=vmem, size = 0x20000, scoped, tag = 'input window, operand 1, single buffered']
    #allocation5 [shape = 's32[1]{0}', space=sflag, size = 0x4, scoped, tag = 'scoped memory for tpu_custom_call.1']
    #allocation6 [shape = 's32[1]{0}', space=sflag, size = 0x4, scoped, tag = 'scoped memory for tpu_custom_call.1']
    #allocation7 [shape = 'u8[8192]{0}', space=vmem, size = 0x2000, scoped, tag = 'output window, operand 0, single buffered']
    %11 = vsyncpa [#allocation5], 0
    %12 = vsyncpa [#allocation6], 0
    // Predicated region
    $region2: #{tpu_custom_call.1} parent=1 // pred_check
      _
    $region3: #{tpu_custom_call.1} parent=1 // pred_check_branch
      %14 = sbr.rel (0) target = $region5
    $region4: #{tpu_custom_call.1} parent=1 // pred_region
      %s16 = ssub.s32 4096, 4096
      %17 = vsyncadd [#allocation5], %s16
      %s18 = sshll.u32 [#allocation4], 4
      %s19 = int_to_ptr.vmem [resolvable:$true] %s18
      %24 = dma.hbm_to_vmem [thread:$0]  %s1, 4096, %s19, [#allocation5], 128, 128, 8
    $region5: #{tpu_custom_call.1} parent=1 // pred_fallthru
      _
    // Predicated region
    $region6: #{tpu_custom_call.1} parent=1 // pred_check
      _
    $region7: #{tpu_custom_call.1} parent=1 // pred_check_branch
      %26 = sbr.rel (0) target = $region9
    $region8: #{tpu_custom_call.1} parent=1 // pred_region
      %27 = dma.done [#allocation5], 4096
    $region9: #{tpu_custom_call.1} parent=1 // pred_fallthru
      _
    %s28 = smul.u32 0, 16
    %s29 = sld [smem:[#allocation3 + %s28]]
    %s30 = scalar_lea.vmem [#allocation4], %s29
    %v31 = vld [vmem:[%s30] sm:$0x1]
    %32 = vst [vmem:[#allocation7] sm:$0x1] %v31
    %s33 = sadd.s32 %s28, 1
    %s34 = sld [smem:[#allocation3 + %s33]]
    %s35 = scalar_lea.vmem [#allocation4], %s34
    %v36 = vld [vmem:[%s35] sm:$0x1]
    %37 = vst [vmem:[#allocation7 + $0x1] sm:$0x1] %v36
    %s38 = sadd.s32 %s28, 2
    %s39 = sld [smem:[#allocation3 + %s38]]
    %s40 = scalar_lea.vmem [#allocation4], %s39
    %v41 = vld [vmem:[%s40] sm:$0x1]
    %42 = vst [vmem:[#allocation7 + $0x2] sm:$0x1] %v41
    %s43 = sadd.s32 %s28, 3
    %s44 = sld [smem:[#allocation3 + %s43]]
    %s45 = scalar_lea.vmem [#allocation4], %s44
    %v46 = vld [vmem:[%s45] sm:$0x1]
    %47 = vst [vmem:[#allocation7 + $0x3] sm:$0x1] %v46
    %s48 = sadd.s32 %s28, 4
    %s49 = sld [smem:[#allocation3 + %s48]]
    %s50 = scalar_lea.vmem [#allocation4], %s49
    %v51 = vld [vmem:[%s50] sm:$0x1]
    %52 = vst [vmem:[#allocation7 + $0x4] sm:$0x1] %v51
    %s53 = sadd.s32 %s28, 5
    %s54 = sld [smem:[#allocation3 + %s53]]
    %s55 = scalar_lea.vmem [#allocation4], %s54
    %v56 = vld [vmem:[%s55] sm:$0x1]
    %57 = vst [vmem:[#allocation7 + $0x5] sm:$0x1] %v56
    %s58 = sadd.s32 %s28, 6
    %s59 = sld [smem:[#allocation3 + %s58]]
    %s60 = scalar_lea.vmem [#allocation4], %s59
    %v61 = vld [vmem:[%s60] sm:$0x1]
    %62 = vst [vmem:[#allocation7 + $0x6] sm:$0x1] %v61
    %s63 = sadd.s32 %s28, 7
    %s64 = sld [smem:[#allocation3 + %s63]]
    %s65 = scalar_lea.vmem [#allocation4], %s64
    %v66 = vld [vmem:[%s65] sm:$0x1]
    %67 = vst [vmem:[#allocation7 + $0x7] sm:$0x1] %v66
    %s68 = sadd.s32 %s28, 8
    %s69 = sld [smem:[#allocation3 + %s68]]
    %s70 = scalar_lea.vmem [#allocation4], %s69
    %v71 = vld [vmem:[%s70] sm:$0x1]
    %72 = vst [vmem:[#allocation7 + $0x8] sm:$0x1] %v71
    %s73 = sadd.s32 %s28, 9
    %s74 = sld [smem:[#allocation3 + %s73]]
    %s75 = scalar_lea.vmem [#allocation4], %s74
    %v76 = vld [vmem:[%s75] sm:$0x1]
    %77 = vst [vmem:[#allocation7 + $0x9] sm:$0x1] %v76
    %s78 = sadd.s32 %s28, 10
    %s79 = sld [smem:[#allocation3 + %s78]]
    %s80 = scalar_lea.vmem [#allocation4], %s79
    %v81 = vld [vmem:[%s80] sm:$0x1]
    %82 = vst [vmem:[#allocation7 + $0xa] sm:$0x1] %v81
    %s83 = sadd.s32 %s28, 11
    %s84 = sld [smem:[#allocation3 + %s83]]
    %s85 = scalar_lea.vmem [#allocation4], %s84
    %v86 = vld [vmem:[%s85] sm:$0x1]
    %87 = vst [vmem:[#allocation7 + $0xb] sm:$0x1] %v86
    %s88 = sadd.s32 %s28, 12
    %s89 = sld [smem:[#allocation3 + %s88]]
    %s90 = scalar_lea.vmem [#allocation4], %s89
    %v91 = vld [vmem:[%s90] sm:$0x1]
    %92 = vst [vmem:[#allocation7 + $0xc] sm:$0x1] %v91
    %s93 = sadd.s32 %s28, 13
    %s94 = sld [smem:[#allocation3 + %s93]]
    %s95 = scalar_lea.vmem [#allocation4], %s94
    %v96 = vld [vmem:[%s95] sm:$0x1]
    %97 = vst [vmem:[#allocation7 + $0xd] sm:$0x1] %v96
    %s98 = sadd.s32 %s28, 14
    %s99 = sld [smem:[#allocation3 + %s98]]
    %s100 = scalar_lea.vmem [#allocation4], %s99
    %v101 = vld [vmem:[%s100] sm:$0x1]
    %102 = vst [vmem:[#allocation7 + $0xe] sm:$0x1] %v101
    %s103 = sadd.s32 %s28, 15
    %s104 = sld [smem:[#allocation3 + %s103]]
    %s105 = scalar_lea.vmem [#allocation4], %s104
    %v106 = vld [vmem:[%s105] sm:$0x1]
    %107 = vst [vmem:[#allocation7 + $0xf] sm:$0x1] %v106
    // Predicated region
    $region10: #{tpu_custom_call.1} parent=1 // pred_check
      _
    $region11: #{tpu_custom_call.1} parent=1 // pred_check_branch
      %109 = sbr.rel (0) target = $region13
    $region12: #{tpu_custom_call.1} parent=1 // pred_region
      %s111 = ssub.s32 256, 256
      %112 = vsyncadd [#allocation6], %s111
      %s113 = sshll.u32 [#allocation7], 4
      %s114 = int_to_ptr.vmem [resolvable:$true] %s113
      %119 = dma.vmem_to_hbm [thread:$0]  %s114, 256, %s2, [#allocation6], 128, 128, 8
    $region13: #{tpu_custom_call.1} parent=1 // pred_fallthru
      _
    // Predicated region
    $region14: #{tpu_custom_call.1} parent=1 // pred_check
      _
    $region15: #{tpu_custom_call.1} parent=1 // pred_check_branch
      %121 = sbr.rel (0) target = $region17
    $region16: #{tpu_custom_call.1} parent=1 // pred_region
      %122 = dma.done [#allocation6], 256
    $region17: #{tpu_custom_call.1} parent=1 // pred_fallthru
      _
    %123 = vsyncpa [#allocation5], 1
    %124 = vsyncpa [#allocation6], 1

</llo_original>
